<compile_context>
chip_gen: v5e
topology: v5e:2x2
jax: 0.10.0
libtpu: 0.0.40
codegen_flags: <defaults>
</compile_context>

<pallas_src>
import math

import numpy as np
import jax
import jax.numpy as jnp
from jax.experimental import pallas as pl
from jax.experimental.pallas import tpu as pltpu

D_MODEL = 256               # module default
HIDDEN = D_MODEL // 2       # 128
N_EMOTIONS = 8
BATCH = 2


# ----------------------------------------------------------------------------- helpers
def _vmem():
    return pl.BlockSpec(memory_space=pltpu.MemorySpace.VMEM)


def _mm_t(x, w):
    """x:(m,k) contracted with w:(n,k) -> (m,n) f32 (PyTorch Linear layout, x @ W^T)."""
    return jax.lax.dot_general(x, w, (((1,), (1,)), ((), ())),
                               preferred_element_type=jnp.float32)


# ----------------------------------------------------------------------------- kernel
def emotional_tagging_kernel(x_ref, w1_ref, b1_ref, w2_ref, b2_ref,
                             ws_ref, bs_ref, emo_ref, sal_ref):
    """Fused EmotionalTagging forward.

    w1 (128,256) / w2 (8,128) are bf16 (halved DMA, native MXU input); all
    activations, biases and outputs are f32.  The 1-wide salience gate runs on
    the VPU/XLU (mul + lane reduce) instead of the MXU.
    """
    x = x_ref[...].astype(jnp.bfloat16)                              # (B, 256) bf16
    h = jnp.maximum(_mm_t(x, w1_ref[...]) + b1_ref[...], 0.0)        # (B, 128) f32
    emo = jax.nn.sigmoid(
        _mm_t(h.astype(jnp.bfloat16), w2_ref[...]) + b2_ref[...])    # (B, 8)   f32
    # salience gate: VPU multiply + cross-lane reduce (no MXU dot with N=1)
    sal = jax.nn.sigmoid(
        jnp.sum(emo * ws_ref[...], axis=-1, keepdims=True) + bs_ref[...])  # (B, 1)
    emo_ref[...] = emo
    sal_ref[...] = sal


# ----------------------------------------------------------------------------- wrapper
@jax.jit
def emotional_tagging(x, params):
    squeeze = (x.ndim == 1)          # torch: experience.dim() == 1 -> unsqueeze(0)
    if squeeze:
        x = x[None, :]
    b = x.shape[0]
    emotions, salience = pl.pallas_call(
        emotional_tagging_kernel,
        out_shape=(jax.ShapeDtypeStruct((b, N_EMOTIONS), jnp.float32),
                   jax.ShapeDtypeStruct((b, 1), jnp.float32)),
        in_specs=[_vmem()] * 7,
        out_specs=(_vmem(), _vmem()),
    )(x, params['w1'], params['b1'], params['w2'], params['b2'],
      params['ws'], params['bs'])
    if squeeze:
        emotions = emotions[0]
        salience = salience[0]
    return emotions, salience


# ----------------------------------------------------------------------------- params
def _linear(key, out_f, in_f):
    """PyTorch nn.Linear default init: U(-1/sqrt(in), 1/sqrt(in))."""
    kw, kb = jax.random.split(key)
    bound = 1.0 / math.sqrt(in_f)
    w = jax.random.uniform(kw, (out_f, in_f), jnp.float32, -bound, bound)
    b = jax.random.uniform(kb, (out_f,), jnp.float32, -bound, bound)
    return w, b


def init_params(key, d_model=D_MODEL):
    hidden = d_model // 2
    k1, k2, k3 = jax.random.split(key, 3)
    w1, b1 = _linear(k1, hidden, d_model)        # emotion_encoder[0]
    w2, b2 = _linear(k2, N_EMOTIONS, hidden)     # emotion_encoder[2]
    ws, bs = _linear(k3, 1, N_EMOTIONS)          # salience_gate

    # kernel-side layout: bf16 matmul weights, f32 (1, n) biases / gate
    kernel_params = dict(
        w1=w1.astype(jnp.bfloat16),              # (128, 256) bf16
        b1=b1[None, :],                          # (1, 128)   f32
        w2=w2.astype(jnp.bfloat16),              # (8, 128)   bf16
        b2=b2[None, :],                          # (1, 8)     f32
        ws=ws,                                   # (1, 8)     f32 (VPU gate)
        bs=bs[None, :],                          # (1, 1)     f32
    )
    ref_params = dict(w1=w1, b1=b1, w2=w2, b2=b2, ws=ws, bs=bs)
    return kernel_params, ref_params


# ----------------------------------------------------------------------------- pure-JAX mirror
def ref_forward(x, r):
    squeeze = (x.ndim == 1)
    if squeeze:
        x = x[None, :]
    h = jnp.maximum(x @ r['w1'].T + r['b1'], 0.0)
    emotions = jax.nn.sigmoid(h @ r['w2'].T + r['b2'])
    salience = jax.nn.sigmoid(emotions @ r['ws'].T + r['bs'])
    if squeeze:
        emotions, salience = emotions[0], salience[0]
    return emotions, salience


# ----------------------------------------------------------------------------- main
if __name__ == "__main__":
    root = jax.random.PRNGKey(0)
    k_param, k_x = jax.random.split(root)
    params, ref_p = init_params(k_param)
    x = jax.random.normal(k_x, (BATCH, D_MODEL), jnp.float32)

    emotions, salience = emotional_tagging(x, params)
    jax.block_until_ready(emotions)
    jax.block_until_ready(salience)

    # correctness vs a pure-JAX (f32) mirror of the PyTorch forward
    r_emo, r_sal = ref_forward(x, ref_p)
    np.testing.assert_allclose(np.asarray(emotions), np.asarray(r_emo), rtol=2e-2, atol=2e-2)
    np.testing.assert_allclose(np.asarray(salience), np.asarray(r_sal), rtol=2e-2, atol=2e-2)
    assert emotions.shape == (BATCH, N_EMOTIONS) and salience.shape == (BATCH, 1)

    # exercise the experience.dim() == 1 path (unsqueeze -> squeeze)
    e1, s1 = emotional_tagging(x[0], params)
    jax.block_until_ready(e1)
    r_e1, r_s1 = ref_forward(x[0], ref_p)
    np.testing.assert_allclose(np.asarray(e1), np.asarray(r_e1), rtol=2e-2, atol=2e-2)
    np.testing.assert_allclose(np.asarray(s1), np.asarray(r_s1), rtol=2e-2, atol=2e-2)
    assert e1.shape == (N_EMOTIONS,) and s1.shape == (1,)

    print("KERNEL_OK")
</pallas_src>

<mosaic_0001>
module attributes {stable_mosaic.version = 11 : i64} {
  func.func @emotional_tagging_kernel(%arg0: memref<2x256xf32, #tpu.memory_space<vmem>>, %arg1: memref<128x256xbf16, #tpu.memory_space<vmem>>, %arg2: memref<1x128xf32, #tpu.memory_space<vmem>>, %arg3: memref<8x128xbf16, #tpu.memory_space<vmem>>, %arg4: memref<1x8xf32, #tpu.memory_space<vmem>>, %arg5: memref<1x8xf32, #tpu.memory_space<vmem>>, %arg6: memref<1x1xf32, #tpu.memory_space<vmem>>, %arg7: memref<2x8xf32, #tpu.memory_space<vmem>>, %arg8: memref<2x1xf32, #tpu.memory_space<vmem>>) attributes {dimension_semantics = [], scalar_prefetch = 0 : i64, scratch_operands = 0 : i64, tpu.core_type = #tpu.core_type<tc>} {
    %c0 = arith.constant 0 : index
    %c0_0 = arith.constant 0 : index
    %0 = vector.load %arg0[%c0, %c0_0] : memref<2x256xf32, #tpu.memory_space<vmem>>, vector<2x256xf32>
    %1 = arith.truncf %0 : vector<2x256xf32> to vector<2x256xbf16>
    %c0_1 = arith.constant 0 : index
    %c0_2 = arith.constant 0 : index
    %2 = vector.load %arg1[%c0_1, %c0_2] : memref<128x256xbf16, #tpu.memory_space<vmem>>, vector<128x256xbf16>
    %cst = arith.constant dense<0.000000e+00> : vector<2x128xf32>
    %3 = tpu.matmul %1, %2, %cst {dimension_numbers = #tpu.dot_dimension_numbers<[1], [1], [0], [0], [0, 0, 1, 0], [], []>} : vector<2x256xbf16>, vector<128x256xbf16>, vector<2x128xf32> -> vector<2x128xf32>
    %c0_3 = arith.constant 0 : index
    %c0_4 = arith.constant 0 : index
    %4 = vector.load %arg2[%c0_3, %c0_4] : memref<1x128xf32, #tpu.memory_space<vmem>>, vector<1x128xf32>
    %5 = vector.broadcast %4 : vector<1x128xf32> to vector<2x128xf32>
    %6 = arith.addf %3, %5 : vector<2x128xf32>
    %cst_5 = arith.constant 0.000000e+00 : f32
    %7 = vector.broadcast %cst_5 : f32 to vector<2x128xf32>
    %8 = arith.maximumf %6, %7 : vector<2x128xf32>
    %9 = arith.truncf %8 : vector<2x128xf32> to vector<2x128xbf16>
    %c0_6 = arith.constant 0 : index
    %c0_7 = arith.constant 0 : index
    %10 = vector.load %arg3[%c0_6, %c0_7] : memref<8x128xbf16, #tpu.memory_space<vmem>>, vector<8x128xbf16>
    %cst_8 = arith.constant dense<0.000000e+00> : vector<2x8xf32>
    %11 = tpu.matmul %9, %10, %cst_8 {dimension_numbers = #tpu.dot_dimension_numbers<[1], [1], [0], [0], [0, 0, 1, 0], [], []>} : vector<2x128xbf16>, vector<8x128xbf16>, vector<2x8xf32> -> vector<2x8xf32>
    %c0_9 = arith.constant 0 : index
    %c0_10 = arith.constant 0 : index
    %12 = vector.load %arg4[%c0_9, %c0_10] : memref<1x8xf32, #tpu.memory_space<vmem>>, vector<1x8xf32>
    %13 = vector.broadcast %12 : vector<1x8xf32> to vector<2x8xf32>
    %14 = arith.addf %11, %13 : vector<2x8xf32>
    %15 = arith.negf %14 : vector<2x8xf32>
    %16 = math.exp %15 : vector<2x8xf32>
    %cst_11 = arith.constant 1.000000e+00 : f32
    %17 = vector.broadcast %cst_11 : f32 to vector<2x8xf32>
    %18 = arith.addf %17, %16 : vector<2x8xf32>
    %19 = arith.divf %17, %18 : vector<2x8xf32>
    %c0_12 = arith.constant 0 : index
    %c0_13 = arith.constant 0 : index
    %20 = vector.load %arg5[%c0_12, %c0_13] : memref<1x8xf32, #tpu.memory_space<vmem>>, vector<1x8xf32>
    %21 = vector.broadcast %20 : vector<1x8xf32> to vector<2x8xf32>
    %22 = arith.mulf %19, %21 : vector<2x8xf32>
    %cst_14 = arith.constant dense<0.000000e+00> : vector<2xf32>
    %23 = vector.multi_reduction <add>, %22, %cst_14 [1] : vector<2x8xf32> to vector<2xf32>
    %24 = vector.shape_cast %23 : vector<2xf32> to vector<2x1xf32>
    %c0_15 = arith.constant 0 : index
    %c0_16 = arith.constant 0 : index
    %25 = vector.load %arg6[%c0_15, %c0_16] : memref<1x1xf32, #tpu.memory_space<vmem>>, vector<1x1xf32>
    %26 = vector.broadcast %25 : vector<1x1xf32> to vector<2x1xf32>
    %27 = arith.addf %24, %26 : vector<2x1xf32>
    %28 = arith.negf %27 : vector<2x1xf32>
    %29 = math.exp %28 : vector<2x1xf32>
    %cst_17 = arith.constant 1.000000e+00 : f32
    %30 = vector.broadcast %cst_17 : f32 to vector<2x1xf32>
    %31 = arith.addf %30, %29 : vector<2x1xf32>
    %32 = arith.divf %30, %31 : vector<2x1xf32>
    %c0_18 = arith.constant 0 : index
    %c0_19 = arith.constant 0 : index
    %33 = vector.load %arg7[%c0_18, %c0_19] : memref<2x8xf32, #tpu.memory_space<vmem>>, vector<2x8xf32>
    tpu.vector_store %arg7[%c0_18, %c0_19], %19 {strides = array<i32>} : memref<2x8xf32, #tpu.memory_space<vmem>>, vector<2x8xf32>,
    %c0_20 = arith.constant 0 : index
    %c0_21 = arith.constant 0 : index
    %34 = vector.load %arg8[%c0_20, %c0_21] : memref<2x1xf32, #tpu.memory_space<vmem>>, vector<2x1xf32>
    tpu.vector_store %arg8[%c0_20, %c0_21], %32 {strides = array<i32>} : memref<2x1xf32, #tpu.memory_space<vmem>>, vector<2x1xf32>,
    return
  }
}

</mosaic_0001>

<llo_original>
// kernel: emotional_tagging.1
$region0: #{emotional_tagging.1}
  #allocation0 [shape = 'u32[]', space=smem, size = 0x4, offset = 0x4, fixed_abs, tag = 'smem constant byte address 0x4 - core index']
  #allocation1 [shape = 'u32[72,128]{1,0:T(1,128)}', space=vmem, size = 0x9000, scoped, tag = 'internal scratch']
  #allocation2 [shape = 'f32[1,1]{1,0:T(1,128)S(1)}', space=vmem, size = 0x200, scoped, tag = 'scoped memory for emotional_tagging.1']
  %s0 = inlined_call_operand.hbm [shape: f32[2,256], index: 0, kind: input, shape index: {}]
  %s1 = inlined_call_operand.hbm [shape: bf16[128,256], index: 1, kind: input, shape index: {}]
  %s2 = inlined_call_operand.vmem [shape: f32[1,128], index: 2, kind: input, shape index: {}]
  %s3 = inlined_call_operand.vmem [shape: bf16[8,128], index: 3, kind: input, shape index: {}]
  %s4 = inlined_call_operand.hbm [shape: f32[1,8], index: 4, kind: input, shape index: {}]
  %s5 = inlined_call_operand.vmem [shape: f32[1,8], index: 5, kind: input, shape index: {}]
  %s6 = inlined_call_operand.<no memory space> [shape: f32[1,1], index: 6, kind: input, shape index: {}]
  %s7 = inlined_call_operand.hbm [shape: f32[2,8], index: 7, kind: output, shape index: {0}]
  %s8 = inlined_call_operand.vmem [shape: f32[2,1], index: 8, kind: output, shape index: {1}]
  %9 = xla_tuple %s7, %s8
  %s10 = sld [smem:[#allocation0]]
  $region58: #{emotional_tagging.1} parent=0
    _
  %s12 = ssub.s32 1, %s10
  %s13 = scalar_select 0, %s12, %s10
  %v14 = vstv %s6
  %15 = vst [vmem:[#allocation2] sm:$0x1] %v14
  $region1: #{emotional_tagging.1} parent=0
    #allocation3 [shape = 'u8[2048]{0}', space=vmem, size = 0x800, scoped, tag = 'input window, operand 0, single buffered']
    #allocation4 [shape = 's32[1]{0}', space=sflag, size = 0x4, scoped, tag = 'scoped memory for emotional_tagging.1']
    #allocation5 [shape = 's32[1]{0}', space=sflag, size = 0x4, scoped, tag = 'scoped memory for emotional_tagging.1']
    #allocation6 [shape = 'u8[65536]{0}', space=vmem, size = 0x10000, scoped, tag = 'input window, operand 1, single buffered']
    #allocation7 [shape = 's32[1]{0}', space=sflag, size = 0x4, scoped, tag = 'scoped memory for emotional_tagging.1']
    #allocation8 [shape = 'u8[512]{0}', space=vmem, size = 0x400, scoped, tag = 'input window, operand 4, single buffered']
    #allocation9 [shape = 'u8[1024]{0}', space=vmem, size = 0x400, scoped, tag = 'output window, operand 0, single buffered']
    %16 = vsyncpa [#allocation4], 0
    %17 = vsyncpa [#allocation7], 0
    %18 = vsyncpa [#allocation5], 0
    // Predicated region
    $region2: #{emotional_tagging.1} parent=1 // pred_check
      _
    $region3: #{emotional_tagging.1} parent=1 // pred_check_branch
      %20 = sbr.rel (0) target = $region5
    $region4: #{emotional_tagging.1} parent=1 // pred_region
      %22 = vsyncadd [#allocation4], 0
      %s24 = sshll.u32 %s0, 4
      %s25 = int_to_ptr.hbm [resolvable:$true] %s24
      %s26 = sshll.u32 [#allocation3], 4
      %s27 = int_to_ptr.vmem [resolvable:$true] %s26
      %29 = dma.hbm_to_vmem [thread:$0]  %s25, 64, %s27, [#allocation4]
    $region5: #{emotional_tagging.1} parent=1 // pred_fallthru
      _
    // Predicated region
    $region6: #{emotional_tagging.1} parent=1 // pred_check
      _
    $region7: #{emotional_tagging.1} parent=1 // pred_check_branch
      %31 = sbr.rel (0) target = $region9
    $region8: #{emotional_tagging.1} parent=1 // pred_region
      %33 = vsyncadd [#allocation7], 0
      %s34 = sshll.u32 %s1, 4
      %s35 = int_to_ptr.hbm [resolvable:$true] %s34
      %s36 = sshll.u32 [#allocation6], 4
      %s37 = int_to_ptr.vmem [resolvable:$true] %s36
      %42 = dma.hbm_to_vmem [thread:$0]  %s35, 2048, %s37, [#allocation7], 128, 128, 8
    $region9: #{emotional_tagging.1} parent=1 // pred_fallthru
      _
    // Predicated region
    $region10: #{emotional_tagging.1} parent=1 // pred_check
      _
    $region11: #{emotional_tagging.1} parent=1 // pred_check_branch
      %44 = sbr.rel (0) target = $region13
    $region12: #{emotional_tagging.1} parent=1 // pred_region
      _
    $region13: #{emotional_tagging.1} parent=1 // pred_fallthru
      _
    // Predicated region
    $region14: #{emotional_tagging.1} parent=1 // pred_check
      _
    $region15: #{emotional_tagging.1} parent=1 // pred_check_branch
      %46 = sbr.rel (0) target = $region17
    $region16: #{emotional_tagging.1} parent=1 // pred_region
      _
    $region17: #{emotional_tagging.1} parent=1 // pred_fallthru
      _
    // Predicated region
    $region18: #{emotional_tagging.1} parent=1 // pred_check
      _
    $region19: #{emotional_tagging.1} parent=1 // pred_check_branch
      %48 = sbr.rel (0) target = $region21
    $region20: #{emotional_tagging.1} parent=1 // pred_region
      %50 = vsyncadd [#allocation7], 0
      %s52 = sshll.u32 %s4, 4
      %s53 = int_to_ptr.hbm [resolvable:$true] %s52
      %s54 = sshll.u32 [#allocation8], 4
      %s55 = int_to_ptr.vmem [resolvable:$true] %s54
      %57 = dma.hbm_to_vmem [thread:$0]  %s53, 16, %s55, [#allocation7]
    $region21: #{emotional_tagging.1} parent=1 // pred_fallthru
      _
    // Predicated region
    $region22: #{emotional_tagging.1} parent=1 // pred_check
      _
    $region23: #{emotional_tagging.1} parent=1 // pred_check_branch
      %59 = sbr.rel (0) target = $region25
    $region24: #{emotional_tagging.1} parent=1 // pred_region
      _
    $region25: #{emotional_tagging.1} parent=1 // pred_fallthru
      _
    // Predicated region
    $region26: #{emotional_tagging.1} parent=1 // pred_check
      _
    $region27: #{emotional_tagging.1} parent=1 // pred_check_branch
      %61 = sbr.rel (0) target = $region29
    $region28: #{emotional_tagging.1} parent=1 // pred_region
      _
    $region29: #{emotional_tagging.1} parent=1 // pred_fallthru
      _
    // Predicated region
    $region30: #{emotional_tagging.1} parent=1 // pred_check
      _
    $region31: #{emotional_tagging.1} parent=1 // pred_check_branch
      %63 = sbr.rel (0) target = $region33
    $region32: #{emotional_tagging.1} parent=1 // pred_region
      %65 = dma.done [#allocation4], 64
    $region33: #{emotional_tagging.1} parent=1 // pred_fallthru
      _
    // Predicated region
    $region34: #{emotional_tagging.1} parent=1 // pred_check
      _
    $region35: #{emotional_tagging.1} parent=1 // pred_check_branch
      %67 = sbr.rel (0) target = $region37
    $region36: #{emotional_tagging.1} parent=1 // pred_region
      %69 = dma.done [#allocation7], 2048
    $region37: #{emotional_tagging.1} parent=1 // pred_fallthru
      _
    // Predicated region
    $region38: #{emotional_tagging.1} parent=1 // pred_check
      _
    $region39: #{emotional_tagging.1} parent=1 // pred_check_branch
      %71 = sbr.rel (0) target = $region41
    $region40: #{emotional_tagging.1} parent=1 // pred_region
      %73 = dma.done [#allocation7], 16
    $region41: #{emotional_tagging.1} parent=1 // pred_fallthru
      _
    %v75 = vld [vmem:[#allocation3] sm:$0xf]
    %77 = vst [vmem:[#allocation1] ss:$4 sm:$0xff] %v75
    %v78 = vld.sshfl [vmem:[#allocation1] sm:$0xff pattern:$0x73625140]
    %v79 = vld.sshfl [vmem:[#allocation1 + $0x8] sm:$0xff pattern:$0x73625140]
    %v82 = vpack.c.bf16 %v78, %v78
    %v83 = vpack.c.bf16 %v79, %v79
    %v84 = vld [vmem:[#allocation6] sm:$0xff]
    %v85 = vld [vmem:[#allocation6 + $0x8] sm:$0xff]
    %v86 = vld [vmem:[#allocation6 + $0x10] sm:$0xff]
    %v87 = vld [vmem:[#allocation6 + $0x18] sm:$0xff]
    %v88 = vld [vmem:[#allocation6 + $0x20] sm:$0xff]
    %v89 = vld [vmem:[#allocation6 + $0x28] sm:$0xff]
    %v90 = vld [vmem:[#allocation6 + $0x30] sm:$0xff]
    %v91 = vld [vmem:[#allocation6 + $0x38] sm:$0xff]
    %v92 = vld [vmem:[#allocation6 + $0x40] sm:$0xff]
    %v93 = vld [vmem:[#allocation6 + $0x48] sm:$0xff]
    %v94 = vld [vmem:[#allocation6 + $0x50] sm:$0xff]
    %v95 = vld [vmem:[#allocation6 + $0x58] sm:$0xff]
    %v96 = vld [vmem:[#allocation6 + $0x60] sm:$0xff]
    %v97 = vld [vmem:[#allocation6 + $0x68] sm:$0xff]
    %v98 = vld [vmem:[#allocation6 + $0x70] sm:$0xff]
    %v99 = vld [vmem:[#allocation6 + $0x78] sm:$0xff]
    %v100 = vld [vmem:[%s2] sm:$0x1]
    %v102 = vperm.slane %v100, 0
    %v120 = vunpack.c.l.b16 %v84
    %v121 = vunpack.c.h.b16 %v84
    %v122 = vunpack.c.l.b16 %v85
    %v123 = vunpack.c.h.b16 %v85
    %v124 = vunpack.c.l.b16 %v86
    %v125 = vunpack.c.h.b16 %v86
    %v126 = vunpack.c.l.b16 %v87
    %v127 = vunpack.c.h.b16 %v87
    %v128 = vunpack.c.l.b16 %v88
    %v129 = vunpack.c.h.b16 %v88
    %v130 = vunpack.c.l.b16 %v89
    %v131 = vunpack.c.h.b16 %v89
    %v132 = vunpack.c.l.b16 %v90
    %v133 = vunpack.c.h.b16 %v90
    %v134 = vunpack.c.l.b16 %v91
    %v135 = vunpack.c.h.b16 %v91
    %v136 = vunpack.c.l.b16 %v92
    %v137 = vunpack.c.h.b16 %v92
    %v138 = vunpack.c.l.b16 %v93
    %v139 = vunpack.c.h.b16 %v93
    %v140 = vunpack.c.l.b16 %v94
    %v141 = vunpack.c.h.b16 %v94
    %v142 = vunpack.c.l.b16 %v95
    %v143 = vunpack.c.h.b16 %v95
    %v144 = vunpack.c.l.b16 %v96
    %v145 = vunpack.c.h.b16 %v96
    %v146 = vunpack.c.l.b16 %v97
    %v147 = vunpack.c.h.b16 %v97
    %v148 = vunpack.c.l.b16 %v98
    %v149 = vunpack.c.h.b16 %v98
    %v150 = vunpack.c.l.b16 %v99
    %v151 = vunpack.c.h.b16 %v99
    %v152 = vpack.c.b16 %v122, %v120
    %v153 = vpack.c.b16 %v123, %v121
    %v154 = vpack.c.b16 %v126, %v124
    %v155 = vpack.c.b16 %v127, %v125
    %v156 = vpack.c.b16 %v130, %v128
    %v157 = vpack.c.b16 %v131, %v129
    %v158 = vpack.c.b16 %v134, %v132
    %v159 = vpack.c.b16 %v135, %v133
    %v160 = vpack.c.b16 %v138, %v136
    %v161 = vpack.c.b16 %v139, %v137
    %v162 = vpack.c.b16 %v142, %v140
    %v163 = vpack.c.b16 %v143, %v141
    %v164 = vpack.c.b16 %v146, %v144
    %v165 = vpack.c.b16 %v147, %v145
    %v166 = vpack.c.b16 %v150, %v148
    %v167 = vpack.c.b16 %v151, %v149
    %184 = vmatpush.bf16.xpose.msra.mxu0 %v166
    %185 = vmatpush.bf16.xpose.msra.mxu0 %v164
    %186 = vmatpush.bf16.xpose.msra.mxu0 %v162
    %187 = vmatpush.bf16.xpose.msra.mxu0 %v160
    %188 = vmatpush.bf16.xpose.msra.mxu0 %v158
    %189 = vmatpush.bf16.xpose.msra.mxu0 %v156
    %190 = vmatpush.bf16.xpose.msra.mxu0 %v154
    %191 = vmatpush.bf16.xpose.msra.mxu0 %v152
    %192 = vmatmul.bf16.gmra.mxu0 %v82
    %v193 = vpop.f32.mrf.mxu0
    %v194 = vadd.f32 %v102, %v193
    %v195 = vpop.f32.mrf.mxu0
    %196 = vdwg.mxu0
    %197 = vmatpush.bf16.xpose.msra.mxu0 %v167
    %198 = vmatpush.bf16.xpose.msra.mxu0 %v165
    %199 = vmatpush.bf16.xpose.msra.mxu0 %v163
    %200 = vmatpush.bf16.xpose.msra.mxu0 %v161
    %201 = vmatpush.bf16.xpose.msra.mxu0 %v159
    %202 = vmatpush.bf16.xpose.msra.mxu0 %v157
    %203 = vmatpush.bf16.xpose.msra.mxu0 %v155
    %204 = vmatpush.bf16.xpose.msra.mxu0 %v153
    %205 = vmatmul.bf16.gmra.mxu0 %v83
    %v206 = vpop.f32.mrf.mxu0
    %v207 = vadd.f32 %v194, %v206
    %v208 = vpop.f32.mrf.mxu0
    %209 = vdwg.mxu0
    %v210 = vmax.f32 %v207, 0.0
    %v211 = vpack.c.bf16 %v210, %v210
    %v212 = vld [vmem:[%s3] sm:$0xf]
    %v213 = vld [vmem:[#allocation8] sm:$0x1]
    %v215 = vperm.slane %v213, 0
    %217 = vmatpush.bf16.xpose.msra.mxu0 0
    %218 = vmatpush.bf16.xpose.msra.mxu0 0
    %219 = vmatpush.bf16.xpose.msra.mxu0 0
    %220 = vmatpush.bf16.xpose.msra.mxu0 0
    %221 = vmatpush.bf16.xpose.msra.mxu0 0
    %222 = vmatpush.bf16.xpose.msra.mxu0 0
    %223 = vmatpush.bf16.xpose.msra.mxu0 0
    %224 = vmatpush.bf16.xpose.msra.mxu0 %v212
    %225 = vmatmul.bf16.gmra.mxu0 %v211
    %v226 = vpop.f32.mrf.mxu0
    %v227 = vadd.f32 %v215, %v226
    %v228 = vpop.f32.mrf.mxu0
    %229 = vdwg.mxu0
    %v230 = vxor.u32 %v227, 2147483648
    %v231 = vmul.f32 %v230, 1.442695
    %v232 = vpow.pop %v231
    %v233 = vadd.f32 %v232, 1.0
    %v234 = vrcp.pop %v233
    %v235 = vmul.f32 %v233, %v234
    %v236 = vsub.f32 1.0, %v235
    %v237 = vmul.f32 %v234, %v236
    %v238 = vadd.f32 %v234, %v237
    %vm239 = vweird.f32 %v233
    %vm240 = vweird.f32 %v234
    %vm241 = vmor %vm239, %vm240
    %v242 = vsel %vm241, %v234, %v238
    %v243 = vand.u32 2147483647, %v233
    %vm244 = vcmp.eq.f32.partialorder %v243, 8.507059e+37
    %v245 = vand.u32 %v233, 2147483648
    %v246 = vor.u32 1.1754944e-38, %v245
    %v247 = vsel %vm244, %v246, %v242
    %v248 = vmul.f32 1.0, %v247
    %v249 = vld [vmem:[%s5] sm:$0x1]
    %v251 = vperm.slane %v249, 0
    %v253 = vmul.f32 %v248, %v251
    %vm254 = vcmask 58368
    %v255 = vsel %vm254, %v253, 0.0
    %256 = vadd.xlane.f32.xlu0 %v255
    %v257 = vpop.xlane.xlu0 %256
    %v258 = vld [vmem:[#allocation2] sm:$0x1]
    %v260 = vperm.slane %v258, 0
    %v262 = vadd.f32 %v257, %v260
    %v263 = vxor.u32 %v262, 2147483648
    %v264 = vmul.f32 %v263, 1.442695
    %v265 = vpow.pop %v264
    %v266 = vadd.f32 %v265, 1.0
    %v267 = vrcp.pop %v266
    %v268 = vmul.f32 %v266, %v267
    %v269 = vsub.f32 1.0, %v268
    %v270 = vmul.f32 %v267, %v269
    %v271 = vadd.f32 %v267, %v270
    %vm272 = vweird.f32 %v266
    %vm273 = vweird.f32 %v267
    %vm274 = vmor %vm272, %vm273
    %v275 = vsel %vm274, %v267, %v271
    %v276 = vand.u32 2147483647, %v266
    %vm277 = vcmp.eq.f32.partialorder %v276, 8.507059e+37
    %v278 = vand.u32 %v266, 2147483648
    %v279 = vor.u32 1.1754944e-38, %v278
    %v280 = vsel %vm277, %v279, %v275
    %v281 = vmul.f32 1.0, %v280
    %282 = vst.msk [vmem:[#allocation9] sm:$0x3] %vm254, %v248
    %vm283 = vcmask 1024
    %284 = vst.msk [vmem:[%s8] sm:$0x3] %vm283, %v281
    // Predicated region
    $region42: #{emotional_tagging.1} parent=1 // pred_check
      _
    $region43: #{emotional_tagging.1} parent=1 // pred_check_branch
      %286 = sbr.rel (0) target = $region45
    $region44: #{emotional_tagging.1} parent=1 // pred_region
      %288 = vsyncadd [#allocation5], 0
      %s290 = sshll.u32 [#allocation9], 4
      %s291 = int_to_ptr.vmem [resolvable:$true] %s290
      %s292 = sshll.u32 %s7, 4
      %s293 = int_to_ptr.hbm [resolvable:$true] %s292
      %295 = dma.vmem_to_hbm [thread:$0]  %s291, 32, %s293, [#allocation5]
    $region45: #{emotional_tagging.1} parent=1 // pred_fallthru
      _
    // Predicated region
    $region46: #{emotional_tagging.1} parent=1 // pred_check
      _
    $region47: #{emotional_tagging.1} parent=1 // pred_check_branch
      %297 = sbr.rel (0) target = $region49
    $region48: #{emotional_tagging.1} parent=1 // pred_region
      _
    $region49: #{emotional_tagging.1} parent=1 // pred_fallthru
      _
    // Predicated region
    $region50: #{emotional_tagging.1} parent=1 // pred_check
      _
    $region51: #{emotional_tagging.1} parent=1 // pred_check_branch
      %299 = sbr.rel (0) target = $region53
    $region52: #{emotional_tagging.1} parent=1 // pred_region
      %301 = dma.done [#allocation5], 32
    $region53: #{emotional_tagging.1} parent=1 // pred_fallthru
      _
    // Predicated region
    $region54: #{emotional_tagging.1} parent=1 // pred_check
      _
    $region55: #{emotional_tagging.1} parent=1 // pred_check_branch
      %303 = sbr.rel (0) target = $region57
    $region56: #{emotional_tagging.1} parent=1 // pred_region
      _
    $region57: #{emotional_tagging.1} parent=1 // pred_fallthru
      _
    %304 = vsyncpa [#allocation4], 1
    %305 = vsyncpa [#allocation7], 1
    %306 = vsyncpa [#allocation5], 1

</llo_original>
